<compile_context>
chip_gen: v5e
topology: v5e:2x2
jax: 0.10.0
libtpu: 0.0.40
codegen_flags: <defaults>
</compile_context>

<pallas_src>
import math

import jax
import jax.numpy as jnp
from jax.experimental import pallas as pl
from jax.experimental.pallas import tpu as pltpu

# ---------------- model hyper-parameters (small, consistent with module) ----
B = 2          # batch
S = 8          # sequence length
HID = 32       # hidden / d_model
HEADS = 4      # attn_heads
DK = HID // HEADS
DFF = 4 * HID  # feed_forward_hidden
EPS = 1e-6
N = B * S      # folded row count


def _layernorm(v, w, b):
    # torch custom LayerNorm: mean over last dim; std with Bessel correction
    # (N-1); divide by (std + eps).  Exact division (negligible cost here).
    n = v.shape[-1]
    mean = jnp.mean(v, axis=-1, keepdims=True)
    diff = v - mean
    var = jnp.sum(diff * diff, axis=-1, keepdims=True) * (1.0 / (n - 1))
    std = jnp.sqrt(var)
    return w * (diff / (std + EPS)) + b


def _gelu_tanh(x):
    c = math.sqrt(2.0 / math.pi)
    return 0.5 * x * (1.0 + jnp.tanh(c * (x + 0.044715 * x * x * x)))


def transformer_block_kernel(
    x_ref, bias_ref,
    wqkv_ref, bqkv_ref, wo_ref, bo_ref,
    w1_ref, b1_ref, w2_ref, b2_ref,
    ln1w_ref, ln1b_ref, ln2w_ref, ln2b_ref,
    o_ref,
):
    x = x_ref[...]                                       # (N, HID)
    bias = bias_ref[...]                                 # (N, N) additive mask

    # ---- fused QKV: one lane-dense (N,HID)@(HID,3*HID) MXU matmul -----------
    # 1/sqrt(DK) already folded into the q columns / q bias wrapper-side.
    qkv = jnp.dot(x, wqkv_ref[...],
                  preferred_element_type=jnp.float32) + bqkv_ref[...]

    # ---- scaled dot-product attention, per head (2-D ops only) --------------
    ctx_heads = []
    for h in range(HEADS):
        q_h = qkv[:, 0 * HID + h * DK: 0 * HID + (h + 1) * DK]   # (N, DK)
        k_h = qkv[:, 1 * HID + h * DK: 1 * HID + (h + 1) * DK]
        v_h = qkv[:, 2 * HID + h * DK: 2 * HID + (h + 1) * DK]
        # scores = q_h @ k_h.T  (contract last dim of both; no materialized .T)
        s = jax.lax.dot_general(q_h, k_h, (((1,), (1,)), ((), ())),
                                preferred_element_type=jnp.float32)  # (N, N)
        s = s + bias
        m = jnp.max(s, axis=-1, keepdims=True)
        e = jnp.exp(s - m)
        p = e * pl.reciprocal(jnp.sum(e, axis=-1, keepdims=True), approx=True)
        ctx_heads.append(jnp.dot(p, v_h, preferred_element_type=jnp.float32))
    ctx = jnp.concatenate(ctx_heads, axis=-1)            # (N, HID), head order

    # ---- output projection: single MXU matmul (head reduction in the MXU) ---
    attn = jnp.dot(ctx, wo_ref[...],
                   preferred_element_type=jnp.float32) + bo_ref[...]

    # ---- input sublayer: LayerNorm(x + attention(x)) -------------------------
    y = _layernorm(x + attn, ln1w_ref[...], ln1b_ref[...])

    # ---- feed forward + output sublayer --------------------------------------
    h1 = _gelu_tanh(jnp.dot(y, w1_ref[...],
                            preferred_element_type=jnp.float32) + b1_ref[...])
    ff = jnp.dot(h1, w2_ref[...],
                 preferred_element_type=jnp.float32) + b2_ref[...]
    o_ref[...] = _layernorm(y + ff, ln2w_ref[...], ln2b_ref[...])


# ---------------- wrapper: layout plumbing outside the kernel ----------------
def pack_params(params):
    """One-time weight repack (hoisted out of the per-call path)."""
    (wq, bq, wk, bk, wv, bv, wo, bo,
     w1, b1, w2, b2, ln1w, ln1b, ln2w, ln2b) = params
    scale = jnp.float32(1.0 / math.sqrt(DK))
    wqkv = jnp.concatenate([wq * scale, wk, wv], axis=1)   # (HID, 3*HID)
    bqkv = jnp.concatenate([bq * scale, bk, bv], axis=1)   # (1, 3*HID)
    return (wqkv, bqkv, wo, bo, w1, b1, w2, b2, ln1w, ln1b, ln2w, ln2b)


@jax.jit
def transformer_block(x, mask, packed):
    """x: (B, S, HID) f32, mask: (B, S, S) int32 (0 => masked)."""
    (wqkv, bqkv, wo, bo, w1, b1, w2, b2,
     ln1w, ln1b, ln2w, ln2b) = packed

    xf = x.reshape(N, HID)

    # Block-diagonal additive mask bias (-1e9 where masked or cross-batch),
    # built with iota compares + a gather instead of a .at[].set() loop.
    neg = jnp.float32(-1e9)
    bi = jax.lax.broadcasted_iota(jnp.int32, (N, N), 0) // S
    bj = jax.lax.broadcasted_iota(jnp.int32, (N, N), 1) // S
    si = jax.lax.broadcasted_iota(jnp.int32, (N, N), 0) % S
    sj = jax.lax.broadcasted_iota(jnp.int32, (N, N), 1) % S
    keep = (bi == bj) & (mask[bi, si, sj] != 0)
    bias = jnp.where(keep, jnp.float32(0.0), neg)

    vmem = pl.BlockSpec(memory_space=pltpu.MemorySpace.VMEM)
    out_flat = pl.pallas_call(
        transformer_block_kernel,
        out_shape=jax.ShapeDtypeStruct((N, HID), jnp.float32),
        in_specs=[vmem] * 14,
        out_specs=vmem,
    )(xf, bias, wqkv, bqkv, wo, bo, w1, b1, w2, b2,
      ln1w, ln1b, ln2w, ln2b)
    return out_flat.reshape(B, S, HID)


# ---------------- pure-JAX reference (module semantics) ----------------------
def reference(x, mask, params):
    (wq, bq, wk, bk, wv, bv, wo, bo,
     w1, b1, w2, b2, ln1w, ln1b, ln2w, ln2b) = params
    outs = []
    for bidx in range(B):
        xb = x[bidx]
        mb = mask[bidx]
        q = xb @ wq + bq
        k = xb @ wk + bk
        v = xb @ wv + bv
        heads = []
        for hh in range(HEADS):
            lo, hi = hh * DK, (hh + 1) * DK
            sc = (q[:, lo:hi] @ k[:, lo:hi].T) / math.sqrt(DK)
            sc = jnp.where(mb == 0, -1e9, sc)
            p = jax.nn.softmax(sc, axis=-1)
            heads.append(p @ v[:, lo:hi])
        attn = jnp.concatenate(heads, -1) @ wo + bo
        y = _layernorm(xb + attn, ln1w, ln1b)
        h1 = _gelu_tanh(y @ w1 + b1)
        ff = h1 @ w2 + b2
        outs.append(_layernorm(y + ff, ln2w, ln2b))
    return jnp.stack(outs)


if __name__ == "__main__":
    key = jax.random.PRNGKey(0)
    keys = jax.random.split(key, 16)

    def w(k_, shape, scale=0.05):
        return (scale * jax.random.normal(k_, shape)).astype(jnp.float32)

    params = (
        w(keys[0], (HID, HID)), w(keys[1], (1, HID)),     # Wq, bq  (in, out)
        w(keys[2], (HID, HID)), w(keys[3], (1, HID)),     # Wk, bk
        w(keys[4], (HID, HID)), w(keys[5], (1, HID)),     # Wv, bv
        w(keys[6], (HID, HID)), w(keys[7], (1, HID)),     # Wo, bo
        w(keys[8], (HID, DFF)), w(keys[9], (1, DFF)),     # W1, b1
        w(keys[10], (DFF, HID)), w(keys[11], (1, HID)),   # W2, b2
        jnp.ones((1, HID), jnp.float32), jnp.zeros((1, HID), jnp.float32),  # ln1
        jnp.ones((1, HID), jnp.float32), jnp.zeros((1, HID), jnp.float32),  # ln2
    )

    x = jax.random.normal(keys[12], (B, S, HID), dtype=jnp.float32)
    # causal-style mask (zeros above diagonal) to exercise the masking path
    mask = jnp.broadcast_to(
        jnp.tril(jnp.ones((S, S), jnp.int32)), (B, S, S)).astype(jnp.int32)

    packed = jax.tree_util.tree_map(jax.block_until_ready, pack_params(params))

    out = jax.block_until_ready(transformer_block(x, mask, packed))
    ref = reference(x, mask, params)
    err = float(jnp.max(jnp.abs(out - ref)))
    assert jnp.allclose(out, ref, atol=2e-2, rtol=2e-2), err
    print("KERNEL_OK")
</pallas_src>

<mosaic_0001>
module attributes {stable_mosaic.version = 11 : i64} {
  func.func @transformer_block_kernel(%arg0: memref<16x32xf32, #tpu.memory_space<vmem>>, %arg1: memref<16x16xf32, #tpu.memory_space<vmem>>, %arg2: memref<32x96xf32, #tpu.memory_space<vmem>>, %arg3: memref<1x96xf32, #tpu.memory_space<vmem>>, %arg4: memref<32x32xf32, #tpu.memory_space<vmem>>, %arg5: memref<1x32xf32, #tpu.memory_space<vmem>>, %arg6: memref<32x128xf32, #tpu.memory_space<vmem>>, %arg7: memref<1x128xf32, #tpu.memory_space<vmem>>, %arg8: memref<128x32xf32, #tpu.memory_space<vmem>>, %arg9: memref<1x32xf32, #tpu.memory_space<vmem>>, %arg10: memref<1x32xf32, #tpu.memory_space<vmem>>, %arg11: memref<1x32xf32, #tpu.memory_space<vmem>>, %arg12: memref<1x32xf32, #tpu.memory_space<vmem>>, %arg13: memref<1x32xf32, #tpu.memory_space<vmem>>, %arg14: memref<16x32xf32, #tpu.memory_space<vmem>>) attributes {dimension_semantics = [], scalar_prefetch = 0 : i64, scratch_operands = 0 : i64, tpu.core_type = #tpu.core_type<tc>} {
    %c0 = arith.constant 0 : index
    %c0_0 = arith.constant 0 : index
    %0 = vector.load %arg0[%c0, %c0_0] : memref<16x32xf32, #tpu.memory_space<vmem>>, vector<16x32xf32>
    %c0_1 = arith.constant 0 : index
    %c0_2 = arith.constant 0 : index
    %1 = vector.load %arg1[%c0_1, %c0_2] : memref<16x16xf32, #tpu.memory_space<vmem>>, vector<16x16xf32>
    %c0_3 = arith.constant 0 : index
    %c0_4 = arith.constant 0 : index
    %2 = vector.load %arg2[%c0_3, %c0_4] : memref<32x96xf32, #tpu.memory_space<vmem>>, vector<32x96xf32>
    %cst = arith.constant dense<0.000000e+00> : vector<16x96xf32>
    %3 = tpu.matmul %0, %2, %cst {dimension_numbers = #tpu.dot_dimension_numbers<[1], [0], [0], [1], [0, 0, 1, 1], [], []>} : vector<16x32xf32>, vector<32x96xf32>, vector<16x96xf32> -> vector<16x96xf32>
    %c0_5 = arith.constant 0 : index
    %c0_6 = arith.constant 0 : index
    %4 = vector.load %arg3[%c0_5, %c0_6] : memref<1x96xf32, #tpu.memory_space<vmem>>, vector<1x96xf32>
    %5 = vector.broadcast %4 : vector<1x96xf32> to vector<16x96xf32>
    %6 = arith.addf %3, %5 : vector<16x96xf32>
    %7 = vector.extract_strided_slice %6 {offsets = [0, 0], sizes = [16, 8], strides = [1, 1]} : vector<16x96xf32> to vector<16x8xf32>
    %8 = vector.extract_strided_slice %6 {offsets = [0, 32], sizes = [16, 8], strides = [1, 1]} : vector<16x96xf32> to vector<16x8xf32>
    %9 = vector.extract_strided_slice %6 {offsets = [0, 64], sizes = [16, 8], strides = [1, 1]} : vector<16x96xf32> to vector<16x8xf32>
    %cst_7 = arith.constant dense<0.000000e+00> : vector<16x16xf32>
    %10 = tpu.matmul %7, %8, %cst_7 {dimension_numbers = #tpu.dot_dimension_numbers<[1], [1], [0], [0], [0, 0, 1, 0], [], []>} : vector<16x8xf32>, vector<16x8xf32>, vector<16x16xf32> -> vector<16x16xf32>
    %11 = arith.addf %10, %1 : vector<16x16xf32>
    %cst_8 = arith.constant dense<0xFF800000> : vector<16xf32>
    %12 = vector.multi_reduction <maximumf>, %11, %cst_8 [1] : vector<16x16xf32> to vector<16xf32>
    %13 = vector.shape_cast %12 : vector<16xf32> to vector<16x1xf32>
    %14 = vector.broadcast %13 : vector<16x1xf32> to vector<16x16xf32>
    %15 = arith.subf %11, %14 : vector<16x16xf32>
    %16 = math.exp %15 : vector<16x16xf32>
    %cst_9 = arith.constant dense<0.000000e+00> : vector<16xf32>
    %17 = vector.multi_reduction <add>, %16, %cst_9 [1] : vector<16x16xf32> to vector<16xf32>
    %18 = vector.shape_cast %17 : vector<16xf32> to vector<16x1xf32>
    %19 = tpu.reciprocal %18 {approx = true} : vector<16x1xf32> -> vector<16x1xf32>
    %20 = vector.broadcast %19 : vector<16x1xf32> to vector<16x16xf32>
    %21 = arith.mulf %16, %20 : vector<16x16xf32>
    %cst_10 = arith.constant dense<0.000000e+00> : vector<16x8xf32>
    %22 = tpu.matmul %21, %9, %cst_10 {dimension_numbers = #tpu.dot_dimension_numbers<[1], [0], [0], [1], [0, 0, 1, 1], [], []>} : vector<16x16xf32>, vector<16x8xf32>, vector<16x8xf32> -> vector<16x8xf32>
    %23 = vector.extract_strided_slice %6 {offsets = [0, 8], sizes = [16, 8], strides = [1, 1]} : vector<16x96xf32> to vector<16x8xf32>
    %24 = vector.extract_strided_slice %6 {offsets = [0, 40], sizes = [16, 8], strides = [1, 1]} : vector<16x96xf32> to vector<16x8xf32>
    %25 = vector.extract_strided_slice %6 {offsets = [0, 72], sizes = [16, 8], strides = [1, 1]} : vector<16x96xf32> to vector<16x8xf32>
    %cst_11 = arith.constant dense<0.000000e+00> : vector<16x16xf32>
    %26 = tpu.matmul %23, %24, %cst_11 {dimension_numbers = #tpu.dot_dimension_numbers<[1], [1], [0], [0], [0, 0, 1, 0], [], []>} : vector<16x8xf32>, vector<16x8xf32>, vector<16x16xf32> -> vector<16x16xf32>
    %27 = arith.addf %26, %1 : vector<16x16xf32>
    %cst_12 = arith.constant dense<0xFF800000> : vector<16xf32>
    %28 = vector.multi_reduction <maximumf>, %27, %cst_12 [1] : vector<16x16xf32> to vector<16xf32>
    %29 = vector.shape_cast %28 : vector<16xf32> to vector<16x1xf32>
    %30 = vector.broadcast %29 : vector<16x1xf32> to vector<16x16xf32>
    %31 = arith.subf %27, %30 : vector<16x16xf32>
    %32 = math.exp %31 : vector<16x16xf32>
    %cst_13 = arith.constant dense<0.000000e+00> : vector<16xf32>
    %33 = vector.multi_reduction <add>, %32, %cst_13 [1] : vector<16x16xf32> to vector<16xf32>
    %34 = vector.shape_cast %33 : vector<16xf32> to vector<16x1xf32>
    %35 = tpu.reciprocal %34 {approx = true} : vector<16x1xf32> -> vector<16x1xf32>
    %36 = vector.broadcast %35 : vector<16x1xf32> to vector<16x16xf32>
    %37 = arith.mulf %32, %36 : vector<16x16xf32>
    %cst_14 = arith.constant dense<0.000000e+00> : vector<16x8xf32>
    %38 = tpu.matmul %37, %25, %cst_14 {dimension_numbers = #tpu.dot_dimension_numbers<[1], [0], [0], [1], [0, 0, 1, 1], [], []>} : vector<16x16xf32>, vector<16x8xf32>, vector<16x8xf32> -> vector<16x8xf32>
    %39 = vector.extract_strided_slice %6 {offsets = [0, 16], sizes = [16, 8], strides = [1, 1]} : vector<16x96xf32> to vector<16x8xf32>
    %40 = vector.extract_strided_slice %6 {offsets = [0, 48], sizes = [16, 8], strides = [1, 1]} : vector<16x96xf32> to vector<16x8xf32>
    %41 = vector.extract_strided_slice %6 {offsets = [0, 80], sizes = [16, 8], strides = [1, 1]} : vector<16x96xf32> to vector<16x8xf32>
    %cst_15 = arith.constant dense<0.000000e+00> : vector<16x16xf32>
    %42 = tpu.matmul %39, %40, %cst_15 {dimension_numbers = #tpu.dot_dimension_numbers<[1], [1], [0], [0], [0, 0, 1, 0], [], []>} : vector<16x8xf32>, vector<16x8xf32>, vector<16x16xf32> -> vector<16x16xf32>
    %43 = arith.addf %42, %1 : vector<16x16xf32>
    %cst_16 = arith.constant dense<0xFF800000> : vector<16xf32>
    %44 = vector.multi_reduction <maximumf>, %43, %cst_16 [1] : vector<16x16xf32> to vector<16xf32>
    %45 = vector.shape_cast %44 : vector<16xf32> to vector<16x1xf32>
    %46 = vector.broadcast %45 : vector<16x1xf32> to vector<16x16xf32>
    %47 = arith.subf %43, %46 : vector<16x16xf32>
    %48 = math.exp %47 : vector<16x16xf32>
    %cst_17 = arith.constant dense<0.000000e+00> : vector<16xf32>
    %49 = vector.multi_reduction <add>, %48, %cst_17 [1] : vector<16x16xf32> to vector<16xf32>
    %50 = vector.shape_cast %49 : vector<16xf32> to vector<16x1xf32>
    %51 = tpu.reciprocal %50 {approx = true} : vector<16x1xf32> -> vector<16x1xf32>
    %52 = vector.broadcast %51 : vector<16x1xf32> to vector<16x16xf32>
    %53 = arith.mulf %48, %52 : vector<16x16xf32>
    %cst_18 = arith.constant dense<0.000000e+00> : vector<16x8xf32>
    %54 = tpu.matmul %53, %41, %cst_18 {dimension_numbers = #tpu.dot_dimension_numbers<[1], [0], [0], [1], [0, 0, 1, 1], [], []>} : vector<16x16xf32>, vector<16x8xf32>, vector<16x8xf32> -> vector<16x8xf32>
    %55 = vector.extract_strided_slice %6 {offsets = [0, 24], sizes = [16, 8], strides = [1, 1]} : vector<16x96xf32> to vector<16x8xf32>
    %56 = vector.extract_strided_slice %6 {offsets = [0, 56], sizes = [16, 8], strides = [1, 1]} : vector<16x96xf32> to vector<16x8xf32>
    %57 = vector.extract_strided_slice %6 {offsets = [0, 88], sizes = [16, 8], strides = [1, 1]} : vector<16x96xf32> to vector<16x8xf32>
    %cst_19 = arith.constant dense<0.000000e+00> : vector<16x16xf32>
    %58 = tpu.matmul %55, %56, %cst_19 {dimension_numbers = #tpu.dot_dimension_numbers<[1], [1], [0], [0], [0, 0, 1, 0], [], []>} : vector<16x8xf32>, vector<16x8xf32>, vector<16x16xf32> -> vector<16x16xf32>
    %59 = arith.addf %58, %1 : vector<16x16xf32>
    %cst_20 = arith.constant dense<0xFF800000> : vector<16xf32>
    %60 = vector.multi_reduction <maximumf>, %59, %cst_20 [1] : vector<16x16xf32> to vector<16xf32>
    %61 = vector.shape_cast %60 : vector<16xf32> to vector<16x1xf32>
    %62 = vector.broadcast %61 : vector<16x1xf32> to vector<16x16xf32>
    %63 = arith.subf %59, %62 : vector<16x16xf32>
    %64 = math.exp %63 : vector<16x16xf32>
    %cst_21 = arith.constant dense<0.000000e+00> : vector<16xf32>
    %65 = vector.multi_reduction <add>, %64, %cst_21 [1] : vector<16x16xf32> to vector<16xf32>
    %66 = vector.shape_cast %65 : vector<16xf32> to vector<16x1xf32>
    %67 = tpu.reciprocal %66 {approx = true} : vector<16x1xf32> -> vector<16x1xf32>
    %68 = vector.broadcast %67 : vector<16x1xf32> to vector<16x16xf32>
    %69 = arith.mulf %64, %68 : vector<16x16xf32>
    %cst_22 = arith.constant dense<0.000000e+00> : vector<16x8xf32>
    %70 = tpu.matmul %69, %57, %cst_22 {dimension_numbers = #tpu.dot_dimension_numbers<[1], [0], [0], [1], [0, 0, 1, 1], [], []>} : vector<16x16xf32>, vector<16x8xf32>, vector<16x8xf32> -> vector<16x8xf32>
    %71 = tpu.concatenate %22, %38, %54, %70 in 1 : vector<16x8xf32>, vector<16x8xf32>, vector<16x8xf32>, vector<16x8xf32> -> vector<16x32xf32>
    %c0_23 = arith.constant 0 : index
    %c0_24 = arith.constant 0 : index
    %72 = vector.load %arg4[%c0_23, %c0_24] : memref<32x32xf32, #tpu.memory_space<vmem>>, vector<32x32xf32>
    %cst_25 = arith.constant dense<0.000000e+00> : vector<16x32xf32>
    %73 = tpu.matmul %71, %72, %cst_25 {dimension_numbers = #tpu.dot_dimension_numbers<[1], [0], [0], [1], [0, 0, 1, 1], [], []>} : vector<16x32xf32>, vector<32x32xf32>, vector<16x32xf32> -> vector<16x32xf32>
    %c0_26 = arith.constant 0 : index
    %c0_27 = arith.constant 0 : index
    %74 = vector.load %arg5[%c0_26, %c0_27] : memref<1x32xf32, #tpu.memory_space<vmem>>, vector<1x32xf32>
    %75 = vector.broadcast %74 : vector<1x32xf32> to vector<16x32xf32>
    %76 = arith.addf %73, %75 : vector<16x32xf32>
    %77 = arith.addf %0, %76 : vector<16x32xf32>
    %c0_28 = arith.constant 0 : index
    %c0_29 = arith.constant 0 : index
    %78 = vector.load %arg10[%c0_28, %c0_29] : memref<1x32xf32, #tpu.memory_space<vmem>>, vector<1x32xf32>
    %c0_30 = arith.constant 0 : index
    %c0_31 = arith.constant 0 : index
    %79 = vector.load %arg11[%c0_30, %c0_31] : memref<1x32xf32, #tpu.memory_space<vmem>>, vector<1x32xf32>
    %cst_32 = arith.constant dense<0.000000e+00> : vector<16xf32>
    %80 = vector.multi_reduction <add>, %77, %cst_32 [1] : vector<16x32xf32> to vector<16xf32>
    %81 = vector.shape_cast %80 : vector<16xf32> to vector<16x1xf32>
    %cst_33 = arith.constant 3.200000e+01 : f32
    %82 = vector.broadcast %cst_33 : f32 to vector<16x1xf32>
    %83 = arith.divf %81, %82 : vector<16x1xf32>
    %84 = vector.broadcast %83 : vector<16x1xf32> to vector<16x32xf32>
    %85 = arith.subf %77, %84 : vector<16x32xf32>
    %86 = arith.mulf %85, %85 : vector<16x32xf32>
    %cst_34 = arith.constant dense<0.000000e+00> : vector<16xf32>
    %87 = vector.multi_reduction <add>, %86, %cst_34 [1] : vector<16x32xf32> to vector<16xf32>
    %88 = vector.shape_cast %87 : vector<16xf32> to vector<16x1xf32>
    %cst_35 = arith.constant 0.0322580636 : f32
    %89 = vector.broadcast %cst_35 : f32 to vector<16x1xf32>
    %90 = arith.mulf %88, %89 : vector<16x1xf32>
    %91 = math.sqrt %90 : vector<16x1xf32>
    %cst_36 = arith.constant 9.99999997E-7 : f32
    %92 = vector.broadcast %cst_36 : f32 to vector<16x1xf32>
    %93 = arith.addf %91, %92 : vector<16x1xf32>
    %94 = vector.broadcast %93 : vector<16x1xf32> to vector<16x32xf32>
    %95 = arith.divf %85, %94 : vector<16x32xf32>
    %96 = vector.broadcast %78 : vector<1x32xf32> to vector<16x32xf32>
    %97 = arith.mulf %96, %95 : vector<16x32xf32>
    %98 = vector.broadcast %79 : vector<1x32xf32> to vector<16x32xf32>
    %99 = arith.addf %97, %98 : vector<16x32xf32>
    %c0_37 = arith.constant 0 : index
    %c0_38 = arith.constant 0 : index
    %100 = vector.load %arg6[%c0_37, %c0_38] : memref<32x128xf32, #tpu.memory_space<vmem>>, vector<32x128xf32>
    %cst_39 = arith.constant dense<0.000000e+00> : vector<16x128xf32>
    %101 = tpu.matmul %99, %100, %cst_39 {dimension_numbers = #tpu.dot_dimension_numbers<[1], [0], [0], [1], [0, 0, 1, 1], [], []>} : vector<16x32xf32>, vector<32x128xf32>, vector<16x128xf32> -> vector<16x128xf32>
    %c0_40 = arith.constant 0 : index
    %c0_41 = arith.constant 0 : index
    %102 = vector.load %arg7[%c0_40, %c0_41] : memref<1x128xf32, #tpu.memory_space<vmem>>, vector<1x128xf32>
    %103 = vector.broadcast %102 : vector<1x128xf32> to vector<16x128xf32>
    %104 = arith.addf %101, %103 : vector<16x128xf32>
    %cst_42 = arith.constant 5.000000e-01 : f32
    %105 = vector.broadcast %cst_42 : f32 to vector<16x128xf32>
    %106 = arith.mulf %105, %104 : vector<16x128xf32>
    %cst_43 = arith.constant 4.471500e-02 : f32
    %107 = vector.broadcast %cst_43 : f32 to vector<16x128xf32>
    %108 = arith.mulf %107, %104 : vector<16x128xf32>
    %109 = arith.mulf %108, %104 : vector<16x128xf32>
    %110 = arith.mulf %109, %104 : vector<16x128xf32>
    %111 = arith.addf %104, %110 : vector<16x128xf32>
    %cst_44 = arith.constant 0.797884583 : f32
    %112 = vector.broadcast %cst_44 : f32 to vector<16x128xf32>
    %113 = arith.mulf %112, %111 : vector<16x128xf32>
    %114 = math.tanh %113 : vector<16x128xf32>
    %cst_45 = arith.constant 1.000000e+00 : f32
    %115 = vector.broadcast %cst_45 : f32 to vector<16x128xf32>
    %116 = arith.addf %115, %114 : vector<16x128xf32>
    %117 = arith.mulf %106, %116 : vector<16x128xf32>
    %c0_46 = arith.constant 0 : index
    %c0_47 = arith.constant 0 : index
    %118 = vector.load %arg8[%c0_46, %c0_47] : memref<128x32xf32, #tpu.memory_space<vmem>>, vector<128x32xf32>
    %cst_48 = arith.constant dense<0.000000e+00> : vector<16x32xf32>
    %119 = tpu.matmul %117, %118, %cst_48 {dimension_numbers = #tpu.dot_dimension_numbers<[1], [0], [0], [1], [0, 0, 1, 1], [], []>} : vector<16x128xf32>, vector<128x32xf32>, vector<16x32xf32> -> vector<16x32xf32>
    %c0_49 = arith.constant 0 : index
    %c0_50 = arith.constant 0 : index
    %120 = vector.load %arg9[%c0_49, %c0_50] : memref<1x32xf32, #tpu.memory_space<vmem>>, vector<1x32xf32>
    %121 = vector.broadcast %120 : vector<1x32xf32> to vector<16x32xf32>
    %122 = arith.addf %119, %121 : vector<16x32xf32>
    %123 = arith.addf %99, %122 : vector<16x32xf32>
    %c0_51 = arith.constant 0 : index
    %c0_52 = arith.constant 0 : index
    %124 = vector.load %arg12[%c0_51, %c0_52] : memref<1x32xf32, #tpu.memory_space<vmem>>, vector<1x32xf32>
    %c0_53 = arith.constant 0 : index
    %c0_54 = arith.constant 0 : index
    %125 = vector.load %arg13[%c0_53, %c0_54] : memref<1x32xf32, #tpu.memory_space<vmem>>, vector<1x32xf32>
    %cst_55 = arith.constant dense<0.000000e+00> : vector<16xf32>
    %126 = vector.multi_reduction <add>, %123, %cst_55 [1] : vector<16x32xf32> to vector<16xf32>
    %127 = vector.shape_cast %126 : vector<16xf32> to vector<16x1xf32>
    %cst_56 = arith.constant 3.200000e+01 : f32
    %128 = vector.broadcast %cst_56 : f32 to vector<16x1xf32>
    %129 = arith.divf %127, %128 : vector<16x1xf32>
    %130 = vector.broadcast %129 : vector<16x1xf32> to vector<16x32xf32>
    %131 = arith.subf %123, %130 : vector<16x32xf32>
    %132 = arith.mulf %131, %131 : vector<16x32xf32>
    %cst_57 = arith.constant dense<0.000000e+00> : vector<16xf32>
    %133 = vector.multi_reduction <add>, %132, %cst_57 [1] : vector<16x32xf32> to vector<16xf32>
    %134 = vector.shape_cast %133 : vector<16xf32> to vector<16x1xf32>
    %cst_58 = arith.constant 0.0322580636 : f32
    %135 = vector.broadcast %cst_58 : f32 to vector<16x1xf32>
    %136 = arith.mulf %134, %135 : vector<16x1xf32>
    %137 = math.sqrt %136 : vector<16x1xf32>
    %cst_59 = arith.constant 9.99999997E-7 : f32
    %138 = vector.broadcast %cst_59 : f32 to vector<16x1xf32>
    %139 = arith.addf %137, %138 : vector<16x1xf32>
    %140 = vector.broadcast %139 : vector<16x1xf32> to vector<16x32xf32>
    %141 = arith.divf %131, %140 : vector<16x32xf32>
    %142 = vector.broadcast %124 : vector<1x32xf32> to vector<16x32xf32>
    %143 = arith.mulf %142, %141 : vector<16x32xf32>
    %144 = vector.broadcast %125 : vector<1x32xf32> to vector<16x32xf32>
    %145 = arith.addf %143, %144 : vector<16x32xf32>
    %c0_60 = arith.constant 0 : index
    %c0_61 = arith.constant 0 : index
    %146 = vector.load %arg14[%c0_60, %c0_61] : memref<16x32xf32, #tpu.memory_space<vmem>>, vector<16x32xf32>
    tpu.vector_store %arg14[%c0_60, %c0_61], %145 {strides = array<i32>} : memref<16x32xf32, #tpu.memory_space<vmem>>, vector<16x32xf32>,
    return
  }
}

</mosaic_0001>

<llo_original>
// kernel: transformer_block.1
$region0: #{transformer_block.1}
  #allocation0 [shape = 'u32[]', space=smem, size = 0x4, offset = 0x4, fixed_abs, tag = 'smem constant byte address 0x4 - core index']
  #allocation1 [shape = 'u32[72,128]{1,0:T(1,128)}', space=vmem, size = 0x9000, scoped, tag = 'internal scratch']
  %s0 = inlined_call_operand.vmem [shape: f32[16,32], index: 0, kind: input, shape index: {}]
  %s1 = inlined_call_operand.vmem [shape: f32[16,16], index: 1, kind: input, shape index: {}]
  %s2 = inlined_call_operand.vmem [shape: f32[32,96], index: 2, kind: input, shape index: {}]
  %s3 = inlined_call_operand.vmem [shape: f32[1,96], index: 3, kind: input, shape index: {}]
  %s4 = inlined_call_operand.vmem [shape: f32[32,32], index: 4, kind: input, shape index: {}]
  %s5 = inlined_call_operand.vmem [shape: f32[1,32], index: 5, kind: input, shape index: {}]
  %s6 = inlined_call_operand.vmem [shape: f32[32,128], index: 6, kind: input, shape index: {}]
  %s7 = inlined_call_operand.vmem [shape: f32[1,128], index: 7, kind: input, shape index: {}]
  %s8 = inlined_call_operand.vmem [shape: f32[128,32], index: 8, kind: input, shape index: {}]
  %s9 = inlined_call_operand.vmem [shape: f32[1,32], index: 9, kind: input, shape index: {}]
  %s10 = inlined_call_operand.vmem [shape: f32[1,32], index: 10, kind: input, shape index: {}]
  %s11 = inlined_call_operand.vmem [shape: f32[1,32], index: 11, kind: input, shape index: {}]
  %s12 = inlined_call_operand.vmem [shape: f32[1,32], index: 12, kind: input, shape index: {}]
  %s13 = inlined_call_operand.vmem [shape: f32[1,32], index: 13, kind: input, shape index: {}]
  %s14 = inlined_call_operand.hbm [shape: f32[16,32], index: 14, kind: output, shape index: {}]
  %s15 = sld [smem:[#allocation0]]
  $region66: #{transformer_block.1} parent=0
    _
  %s17 = ssub.s32 1, %s15
  %s18 = scalar_select 0, %s17, %s15
  $region1: #{transformer_block.1} parent=0
    #allocation2 [shape = 'u8[8192]{0}', space=vmem, size = 0x2000, scoped, tag = 'output window, operand 0, single buffered']
    #allocation3 [shape = 's32[1]{0}', space=sflag, size = 0x4, scoped, tag = 'scoped memory for transformer_block.1']
    %19 = vsyncpa [#allocation3], 0
    // Predicated region
    $region2: #{transformer_block.1} parent=1 // pred_check
      _
    $region3: #{transformer_block.1} parent=1 // pred_check_branch
      %21 = sbr.rel (0) target = $region5
    $region4: #{transformer_block.1} parent=1 // pred_region
      _
    $region5: #{transformer_block.1} parent=1 // pred_fallthru
      _
    // Predicated region
    $region6: #{transformer_block.1} parent=1 // pred_check
      _
    $region7: #{transformer_block.1} parent=1 // pred_check_branch
      %23 = sbr.rel (0) target = $region9
    $region8: #{transformer_block.1} parent=1 // pred_region
      _
    $region9: #{transformer_block.1} parent=1 // pred_fallthru
      _
    // Predicated region
    $region10: #{transformer_block.1} parent=1 // pred_check
      _
    $region11: #{transformer_block.1} parent=1 // pred_check_branch
      %25 = sbr.rel (0) target = $region13
    $region12: #{transformer_block.1} parent=1 // pred_region
      _
    $region13: #{transformer_block.1} parent=1 // pred_fallthru
      _
    // Predicated region
    $region14: #{transformer_block.1} parent=1 // pred_check
      _
    $region15: #{transformer_block.1} parent=1 // pred_check_branch
      %27 = sbr.rel (0) target = $region17
    $region16: #{transformer_block.1} parent=1 // pred_region
      _
    $region17: #{transformer_block.1} parent=1 // pred_fallthru
      _
    // Predicated region
    $region18: #{transformer_block.1} parent=1 // pred_check
      _
    $region19: #{transformer_block.1} parent=1 // pred_check_branch
      %29 = sbr.rel (0) target = $region21
    $region20: #{transformer_block.1} parent=1 // pred_region
      _
    $region21: #{transformer_block.1} parent=1 // pred_fallthru
      _
    // Predicated region
    $region22: #{transformer_block.1} parent=1 // pred_check
      _
    $region23: #{transformer_block.1} parent=1 // pred_check_branch
      %31 = sbr.rel (0) target = $region25
    $region24: #{transformer_block.1} parent=1 // pred_region
      _
    $region25: #{transformer_block.1} parent=1 // pred_fallthru
      _
    // Predicated region
    $region26: #{transformer_block.1} parent=1 // pred_check
      _
    $region27: #{transformer_block.1} parent=1 // pred_check_branch
      %33 = sbr.rel (0) target = $region29
    $region28: #{transformer_block.1} parent=1 // pred_region
      _
    $region29: #{transformer_block.1} parent=1 // pred_fallthru
      _
    // Predicated region
    $region30: #{transformer_block.1} parent=1 // pred_check
      _
    $region31: #{transformer_block.1} parent=1 // pred_check_branch
      %35 = sbr.rel (0) target = $region33
    $region32: #{transformer_block.1} parent=1 // pred_region
      _
    $region33: #{transformer_block.1} parent=1 // pred_fallthru
      _
    // Predicated region
    $region34: #{transformer_block.1} parent=1 // pred_check
      _
    $region35: #{transformer_block.1} parent=1 // pred_check_branch
      %37 = sbr.rel (0) target = $region37
    $region36: #{transformer_block.1} parent=1 // pred_region
      _
    $region37: #{transformer_block.1} parent=1 // pred_fallthru
      _
    // Predicated region
    $region38: #{transformer_block.1} parent=1 // pred_check
      _
    $region39: #{transformer_block.1} parent=1 // pred_check_branch
      %39 = sbr.rel (0) target = $region41
    $region40: #{transformer_block.1} parent=1 // pred_region
      _
    $region41: #{transformer_block.1} parent=1 // pred_fallthru
      _
    // Predicated region
    $region42: #{transformer_block.1} parent=1 // pred_check
      _
    $region43: #{transformer_block.1} parent=1 // pred_check_branch
      %41 = sbr.rel (0) target = $region45
    $region44: #{transformer_block.1} parent=1 // pred_region
      _
    $region45: #{transformer_block.1} parent=1 // pred_fallthru
      _
    // Predicated region
    $region46: #{transformer_block.1} parent=1 // pred_check
      _
    $region47: #{transformer_block.1} parent=1 // pred_check_branch
      %43 = sbr.rel (0) target = $region49
    $region48: #{transformer_block.1} parent=1 // pred_region
      _
    $region49: #{transformer_block.1} parent=1 // pred_fallthru
      _
    // Predicated region
    $region50: #{transformer_block.1} parent=1 // pred_check
      _
    $region51: #{transformer_block.1} parent=1 // pred_check_branch
      %45 = sbr.rel (0) target = $region53
    $region52: #{transformer_block.1} parent=1 // pred_region
      _
    $region53: #{transformer_block.1} parent=1 // pred_fallthru
      _
    // Predicated region
    $region54: #{transformer_block.1} parent=1 // pred_check
      _
    $region55: #{transformer_block.1} parent=1 // pred_check_branch
      %47 = sbr.rel (0) target = $region57
    $region56: #{transformer_block.1} parent=1 // pred_region
      _
    $region57: #{transformer_block.1} parent=1 // pred_fallthru
      _
    %v48 = vld [vmem:[%s0] sm:$0xff]
    %v49 = vld [vmem:[%s0 + $0x8] sm:$0xff]
    %v50 = vld [vmem:[%s1] sm:$0xff]
    %v51 = vld [vmem:[%s1 + $0x8] sm:$0xff]
    %v52 = vld [vmem:[%s2] sm:$0xff]
    %v53 = vld [vmem:[%s2 + $0x8] sm:$0xff]
    %v54 = vld [vmem:[%s2 + $0x10] sm:$0xff]
    %v55 = vld [vmem:[%s2 + $0x18] sm:$0xff]
    %v56 = vld [vmem:[%s3] sm:$0x1]
    %v58 = vperm.slane %v56, 0
    %vm60 = vcmask 261120
    %v62 = vsel %vm60, %v48, 0
    %v65 = vsel %vm60, %v49, 0
    %67 = vmatpush.msra.mxu0 0.0
    %68 = vmatpush.msra.mxu0 0.0
    %69 = vmatpush.msra.mxu0 0.0
    %70 = vmatpush.msra.mxu0 0.0
    %71 = vmatpush.msra.mxu0 0.0
    %72 = vmatpush.msra.mxu0 0.0
    %73 = vmatpush.msra.mxu0 0.0
    %74 = vmatpush.msra.mxu0 0.0
    %75 = vmatpush.msra.mxu0 0.0
    %76 = vmatpush.msra.mxu0 0.0
    %77 = vmatpush.msra.mxu0 0.0
    %78 = vmatpush.msra.mxu0 0.0
    %79 = vmatpush.msra.mxu0 %v55
    %80 = vmatpush.msra.mxu0 %v54
    %81 = vmatpush.msra.mxu0 %v53
    %82 = vmatpush.msra.mxu0 %v52
    %83 = vmatmul.f32.gmra.mxu0 %v62
    %v84 = vpop.f32.mrf.mxu0
    %v85 = vadd.f32 %v58, %v84
    %86 = vmatmul.f32.gmra.mxu0 %v65
    %v87 = vpop.f32.mrf.mxu0
    %v88 = vadd.f32 %v58, %v87
    %89 = vdwg.mxu0
    %92 = vrot.lane.b32.xlu0 %v85, 96
    %v93 = vpop.permute.xlu0 %92
    %94 = vrot.lane.b32.xlu0 %v88, 96
    %v95 = vpop.permute.xlu0 %94
    %vm96 = vcmask 64512
    %v97 = vsel %vm96, %v85, 0
    %v99 = vsel %vm96, %v88, 0
    %v101 = vsel %vm96, %v93, 0
    %v103 = vsel %vm96, %v95, 0
    %105 = vmatpush.xpose.msra.mxu0 0.0
    %106 = vmatpush.xpose.msra.mxu0 0.0
    %107 = vmatpush.xpose.msra.mxu0 0.0
    %108 = vmatpush.xpose.msra.mxu0 0.0
    %109 = vmatpush.xpose.msra.mxu0 0.0
    %110 = vmatpush.xpose.msra.mxu0 0.0
    %111 = vmatpush.xpose.msra.mxu0 0.0
    %112 = vmatpush.xpose.msra.mxu0 0.0
    %113 = vmatpush.xpose.msra.mxu0 0.0
    %114 = vmatpush.xpose.msra.mxu0 0.0
    %115 = vmatpush.xpose.msra.mxu0 0.0
    %116 = vmatpush.xpose.msra.mxu0 0.0
    %117 = vmatpush.xpose.msra.mxu0 0.0
    %118 = vmatpush.xpose.msra.mxu0 0.0
    %119 = vmatpush.xpose.msra.mxu0 %v103
    %120 = vmatpush.xpose.msra.mxu0 %v101
    %121 = vmatmul.f32.gmra.mxu0 %v97
    %v122 = vpop.f32.mrf.mxu0
    %v123 = vadd.f32 %v50, %v122
    %124 = vmatmul.f32.gmra.mxu0 %v99
    %v125 = vpop.f32.mrf.mxu0
    %v126 = vadd.f32 %v51, %v125
    %127 = vdwg.mxu0
    %vm128 = vcmask 130048
    %v129 = vsel %vm128, %v123, -inf
    %130 = vmax.xlane.f32.xlu0 %v129
    %v131 = vpop.xlane.xlu0 %130
    %v132 = vsel %vm128, %v126, -inf
    %133 = vmax.xlane.f32.xlu0 %v132
    %v134 = vpop.xlane.xlu0 %133
    %v135 = vsub.f32 %v123, %v131
    %v136 = vsub.f32 %v126, %v134
    %v137 = vmul.f32 %v135, 1.442695
    %v138 = vpow.pop %v137
    %v139 = vmul.f32 %v136, 1.442695
    %v140 = vpow.pop %v139
    %v141 = vsel %vm128, %v138, 0.0
    %142 = vadd.xlane.f32.xlu0 %v141
    %v143 = vpop.xlane.xlu0 %142
    %v144 = vsel %vm128, %v140, 0.0
    %145 = vadd.xlane.f32.xlu0 %v144
    %v146 = vpop.xlane.xlu0 %145
    %v147 = vrcp.pop %v143
    %v148 = vrcp.pop %v146
    %v149 = vmul.f32 %v138, %v147
    %v150 = vmul.f32 %v140, %v148
    %151 = vrot.lane.b32.xlu0 %v85, 64
    %v152 = vpop.permute.xlu0 %151
    %153 = vrot.lane.b32.xlu0 %v88, 64
    %v154 = vpop.permute.xlu0 %153
    %v158 = vsel %vm128, %v149, 0
    %v161 = vsel %vm128, %v150, 0
    %163 = vmatpush.msra.mxu0 0.0
    %164 = vmatpush.msra.mxu0 0.0
    %165 = vmatpush.msra.mxu0 0.0
    %166 = vmatpush.msra.mxu0 0.0
    %167 = vmatpush.msra.mxu0 0.0
    %168 = vmatpush.msra.mxu0 0.0
    %169 = vmatpush.msra.mxu0 0.0
    %170 = vmatpush.msra.mxu0 0.0
    %171 = vmatpush.msra.mxu0 0.0
    %172 = vmatpush.msra.mxu0 0.0
    %173 = vmatpush.msra.mxu0 0.0
    %174 = vmatpush.msra.mxu0 0.0
    %175 = vmatpush.msra.mxu0 0.0
    %176 = vmatpush.msra.mxu0 0.0
    %177 = vmatpush.msra.mxu0 %v154
    %178 = vmatpush.msra.mxu0 %v152
    %179 = vmatmul.f32.gmra.mxu0 %v158
    %v180 = vpop.f32.mrf.mxu0
    %v181 = vadd.f32 0.0, %v180
    %182 = vmatmul.f32.gmra.mxu0 %v161
    %v183 = vpop.f32.mrf.mxu0
    %v184 = vadd.f32 0.0, %v183
    %185 = vdwg.mxu0
    %186 = vrot.lane.b32.xlu0 %v85, 120
    %v187 = vpop.permute.xlu0 %186
    %188 = vrot.lane.b32.xlu0 %v88, 120
    %v189 = vpop.permute.xlu0 %188
    %190 = vrot.lane.b32.xlu0 %v85, 88
    %v191 = vpop.permute.xlu0 %190
    %192 = vrot.lane.b32.xlu0 %v88, 88
    %v193 = vpop.permute.xlu0 %192
    %v194 = vsel %vm96, %v187, 0
    %v196 = vsel %vm96, %v189, 0
    %v198 = vsel %vm96, %v191, 0
    %v200 = vsel %vm96, %v193, 0
    %202 = vmatpush.xpose.msra.mxu0 0.0
    %203 = vmatpush.xpose.msra.mxu0 0.0
    %204 = vmatpush.xpose.msra.mxu0 0.0
    %205 = vmatpush.xpose.msra.mxu0 0.0
    %206 = vmatpush.xpose.msra.mxu0 0.0
    %207 = vmatpush.xpose.msra.mxu0 0.0
    %208 = vmatpush.xpose.msra.mxu0 0.0
    %209 = vmatpush.xpose.msra.mxu0 0.0
    %210 = vmatpush.xpose.msra.mxu0 0.0
    %211 = vmatpush.xpose.msra.mxu0 0.0
    %212 = vmatpush.xpose.msra.mxu0 0.0
    %213 = vmatpush.xpose.msra.mxu0 0.0
    %214 = vmatpush.xpose.msra.mxu0 0.0
    %215 = vmatpush.xpose.msra.mxu0 0.0
    %216 = vmatpush.xpose.msra.mxu0 %v200
    %217 = vmatpush.xpose.msra.mxu0 %v198
    %218 = vmatmul.f32.gmra.mxu0 %v194
    %v219 = vpop.f32.mrf.mxu0
    %v220 = vadd.f32 %v50, %v219
    %221 = vmatmul.f32.gmra.mxu0 %v196
    %v222 = vpop.f32.mrf.mxu0
    %v223 = vadd.f32 %v51, %v222
    %224 = vdwg.mxu0
    %v225 = vsel %vm128, %v220, -inf
    %226 = vmax.xlane.f32.xlu0 %v225
    %v227 = vpop.xlane.xlu0 %226
    %v228 = vsel %vm128, %v223, -inf
    %229 = vmax.xlane.f32.xlu0 %v228
    %v230 = vpop.xlane.xlu0 %229
    %v231 = vsub.f32 %v220, %v227
    %v232 = vsub.f32 %v223, %v230
    %v233 = vmul.f32 %v231, 1.442695
    %v234 = vpow.pop %v233
    %v235 = vmul.f32 %v232, 1.442695
    %v236 = vpow.pop %v235
    %v237 = vsel %vm128, %v234, 0.0
    %238 = vadd.xlane.f32.xlu0 %v237
    %v239 = vpop.xlane.xlu0 %238
    %v240 = vsel %vm128, %v236, 0.0
    %241 = vadd.xlane.f32.xlu0 %v240
    %v242 = vpop.xlane.xlu0 %241
    %v243 = vrcp.pop %v239
    %v244 = vrcp.pop %v242
    %v245 = vmul.f32 %v234, %v243
    %v246 = vmul.f32 %v236, %v244
    %247 = vrot.lane.b32.xlu0 %v85, 56
    %v248 = vpop.permute.xlu0 %247
    %249 = vrot.lane.b32.xlu0 %v88, 56
    %v250 = vpop.permute.xlu0 %249
    %v254 = vsel %vm128, %v245, 0
    %v257 = vsel %vm128, %v246, 0
    %259 = vmatpush.msra.mxu0 0.0
    %260 = vmatpush.msra.mxu0 0.0
    %261 = vmatpush.msra.mxu0 0.0
    %262 = vmatpush.msra.mxu0 0.0
    %263 = vmatpush.msra.mxu0 0.0
    %264 = vmatpush.msra.mxu0 0.0
    %265 = vmatpush.msra.mxu0 0.0
    %266 = vmatpush.msra.mxu0 0.0
    %267 = vmatpush.msra.mxu0 0.0
    %268 = vmatpush.msra.mxu0 0.0
    %269 = vmatpush.msra.mxu0 0.0
    %270 = vmatpush.msra.mxu0 0.0
    %271 = vmatpush.msra.mxu0 0.0
    %272 = vmatpush.msra.mxu0 0.0
    %273 = vmatpush.msra.mxu0 %v250
    %274 = vmatpush.msra.mxu0 %v248
    %275 = vmatmul.f32.gmra.mxu0 %v254
    %v276 = vpop.f32.mrf.mxu0
    %v277 = vadd.f32 0.0, %v276
    %278 = vmatmul.f32.gmra.mxu0 %v257
    %v279 = vpop.f32.mrf.mxu0
    %v280 = vadd.f32 0.0, %v279
    %281 = vdwg.mxu0
    %282 = vrot.lane.b32.xlu0 %v85, 112
    %v283 = vpop.permute.xlu0 %282
    %284 = vrot.lane.b32.xlu0 %v88, 112
    %v285 = vpop.permute.xlu0 %284
    %286 = vrot.lane.b32.xlu0 %v85, 80
    %v287 = vpop.permute.xlu0 %286
    %288 = vrot.lane.b32.xlu0 %v88, 80
    %v289 = vpop.permute.xlu0 %288
    %v290 = vsel %vm96, %v283, 0
    %v292 = vsel %vm96, %v285, 0
    %v294 = vsel %vm96, %v287, 0
    %v296 = vsel %vm96, %v289, 0
    %298 = vmatpush.xpose.msra.mxu0 0.0
    %299 = vmatpush.xpose.msra.mxu0 0.0
    %300 = vmatpush.xpose.msra.mxu0 0.0
    %301 = vmatpush.xpose.msra.mxu0 0.0
    %302 = vmatpush.xpose.msra.mxu0 0.0
    %303 = vmatpush.xpose.msra.mxu0 0.0
    %304 = vmatpush.xpose.msra.mxu0 0.0
    %305 = vmatpush.xpose.msra.mxu0 0.0
    %306 = vmatpush.xpose.msra.mxu0 0.0
    %307 = vmatpush.xpose.msra.mxu0 0.0
    %308 = vmatpush.xpose.msra.mxu0 0.0
    %309 = vmatpush.xpose.msra.mxu0 0.0
    %310 = vmatpush.xpose.msra.mxu0 0.0
    %311 = vmatpush.xpose.msra.mxu0 0.0
    %312 = vmatpush.xpose.msra.mxu0 %v296
    %313 = vmatpush.xpose.msra.mxu0 %v294
    %314 = vmatmul.f32.gmra.mxu0 %v290
    %v315 = vpop.f32.mrf.mxu0
    %v316 = vadd.f32 %v50, %v315
    %317 = vmatmul.f32.gmra.mxu0 %v292
    %v318 = vpop.f32.mrf.mxu0
    %v319 = vadd.f32 %v51, %v318
    %320 = vdwg.mxu0
    %v321 = vsel %vm128, %v316, -inf
    %322 = vmax.xlane.f32.xlu0 %v321
    %v323 = vpop.xlane.xlu0 %322
    %v324 = vsel %vm128, %v319, -inf
    %325 = vmax.xlane.f32.xlu0 %v324
    %v326 = vpop.xlane.xlu0 %325
    %v327 = vsub.f32 %v316, %v323
    %v328 = vsub.f32 %v319, %v326
    %v329 = vmul.f32 %v327, 1.442695
    %v330 = vpow.pop %v329
    %v331 = vmul.f32 %v328, 1.442695
    %v332 = vpow.pop %v331
    %v333 = vsel %vm128, %v330, 0.0
    %334 = vadd.xlane.f32.xlu0 %v333
    %v335 = vpop.xlane.xlu0 %334
    %v336 = vsel %vm128, %v332, 0.0
    %337 = vadd.xlane.f32.xlu0 %v336
    %v338 = vpop.xlane.xlu0 %337
    %v339 = vrcp.pop %v335
    %v340 = vrcp.pop %v338
    %v341 = vmul.f32 %v330, %v339
    %v342 = vmul.f32 %v332, %v340
    %343 = vrot.lane.b32.xlu0 %v85, 48
    %v344 = vpop.permute.xlu0 %343
    %345 = vrot.lane.b32.xlu0 %v88, 48
    %v346 = vpop.permute.xlu0 %345
    %v350 = vsel %vm128, %v341, 0
    %v353 = vsel %vm128, %v342, 0
    %355 = vmatpush.msra.mxu0 0.0
    %356 = vmatpush.msra.mxu0 0.0
    %357 = vmatpush.msra.mxu0 0.0
    %358 = vmatpush.msra.mxu0 0.0
    %359 = vmatpush.msra.mxu0 0.0
    %360 = vmatpush.msra.mxu0 0.0
    %361 = vmatpush.msra.mxu0 0.0
    %362 = vmatpush.msra.mxu0 0.0
    %363 = vmatpush.msra.mxu0 0.0
    %364 = vmatpush.msra.mxu0 0.0
    %365 = vmatpush.msra.mxu0 0.0
    %366 = vmatpush.msra.mxu0 0.0
    %367 = vmatpush.msra.mxu0 0.0
    %368 = vmatpush.msra.mxu0 0.0
    %369 = vmatpush.msra.mxu0 %v346
    %370 = vmatpush.msra.mxu0 %v344
    %371 = vmatmul.f32.gmra.mxu0 %v350
    %v372 = vpop.f32.mrf.mxu0
    %v373 = vadd.f32 0.0, %v372
    %374 = vmatmul.f32.gmra.mxu0 %v353
    %v375 = vpop.f32.mrf.mxu0
    %v376 = vadd.f32 0.0, %v375
    %377 = vdwg.mxu0
    %378 = vrot.lane.b32.xlu0 %v85, 104
    %v379 = vpop.permute.xlu0 %378
    %380 = vrot.lane.b32.xlu0 %v88, 104
    %v381 = vpop.permute.xlu0 %380
    %382 = vrot.lane.b32.xlu0 %v85, 72
    %v383 = vpop.permute.xlu0 %382
    %384 = vrot.lane.b32.xlu0 %v88, 72
    %v385 = vpop.permute.xlu0 %384
    %v386 = vsel %vm96, %v379, 0
    %v388 = vsel %vm96, %v381, 0
    %v390 = vsel %vm96, %v383, 0
    %v392 = vsel %vm96, %v385, 0
    %394 = vmatpush.xpose.msra.mxu0 0.0
    %395 = vmatpush.xpose.msra.mxu0 0.0
    %396 = vmatpush.xpose.msra.mxu0 0.0
    %397 = vmatpush.xpose.msra.mxu0 0.0
    %398 = vmatpush.xpose.msra.mxu0 0.0
    %399 = vmatpush.xpose.msra.mxu0 0.0
    %400 = vmatpush.xpose.msra.mxu0 0.0
    %401 = vmatpush.xpose.msra.mxu0 0.0
    %402 = vmatpush.xpose.msra.mxu0 0.0
    %403 = vmatpush.xpose.msra.mxu0 0.0
    %404 = vmatpush.xpose.msra.mxu0 0.0
    %405 = vmatpush.xpose.msra.mxu0 0.0
    %406 = vmatpush.xpose.msra.mxu0 0.0
    %407 = vmatpush.xpose.msra.mxu0 0.0
    %408 = vmatpush.xpose.msra.mxu0 %v392
    %409 = vmatpush.xpose.msra.mxu0 %v390
    %410 = vmatmul.f32.gmra.mxu0 %v386
    %v411 = vpop.f32.mrf.mxu0
    %v412 = vadd.f32 %v50, %v411
    %413 = vmatmul.f32.gmra.mxu0 %v388
    %v414 = vpop.f32.mrf.mxu0
    %v415 = vadd.f32 %v51, %v414
    %416 = vdwg.mxu0
    %v417 = vsel %vm128, %v412, -inf
    %418 = vmax.xlane.f32.xlu0 %v417
    %v419 = vpop.xlane.xlu0 %418
    %v420 = vsel %vm128, %v415, -inf
    %421 = vmax.xlane.f32.xlu0 %v420
    %v422 = vpop.xlane.xlu0 %421
    %v423 = vsub.f32 %v412, %v419
    %v424 = vsub.f32 %v415, %v422
    %v425 = vmul.f32 %v423, 1.442695
    %v426 = vpow.pop %v425
    %v427 = vmul.f32 %v424, 1.442695
    %v428 = vpow.pop %v427
    %v429 = vsel %vm128, %v426, 0.0
    %430 = vadd.xlane.f32.xlu0 %v429
    %v431 = vpop.xlane.xlu0 %430
    %v432 = vsel %vm128, %v428, 0.0
    %433 = vadd.xlane.f32.xlu0 %v432
    %v434 = vpop.xlane.xlu0 %433
    %v435 = vrcp.pop %v431
    %v436 = vrcp.pop %v434
    %v437 = vmul.f32 %v426, %v435
    %v438 = vmul.f32 %v428, %v436
    %439 = vrot.lane.b32.xlu0 %v85, 40
    %v440 = vpop.permute.xlu0 %439
    %441 = vrot.lane.b32.xlu0 %v88, 40
    %v442 = vpop.permute.xlu0 %441
    %v446 = vsel %vm128, %v437, 0
    %v449 = vsel %vm128, %v438, 0
    %451 = vmatpush.msra.mxu0 0.0
    %452 = vmatpush.msra.mxu0 0.0
    %453 = vmatpush.msra.mxu0 0.0
    %454 = vmatpush.msra.mxu0 0.0
    %455 = vmatpush.msra.mxu0 0.0
    %456 = vmatpush.msra.mxu0 0.0
    %457 = vmatpush.msra.mxu0 0.0
    %458 = vmatpush.msra.mxu0 0.0
    %459 = vmatpush.msra.mxu0 0.0
    %460 = vmatpush.msra.mxu0 0.0
    %461 = vmatpush.msra.mxu0 0.0
    %462 = vmatpush.msra.mxu0 0.0
    %463 = vmatpush.msra.mxu0 0.0
    %464 = vmatpush.msra.mxu0 0.0
    %465 = vmatpush.msra.mxu0 %v442
    %466 = vmatpush.msra.mxu0 %v440
    %467 = vmatmul.f32.gmra.mxu0 %v446
    %v468 = vpop.f32.mrf.mxu0
    %v469 = vadd.f32 0.0, %v468
    %470 = vmatmul.f32.gmra.mxu0 %v449
    %v471 = vpop.f32.mrf.mxu0
    %v472 = vadd.f32 0.0, %v471
    %473 = vdwg.mxu0
    %476 = vrot.lane.b32.xlu0 %v277, 8
    %v477 = vpop.permute.xlu0 %476
    %478 = vrot.lane.b32.xlu0 %v280, 8
    %v479 = vpop.permute.xlu0 %478
    %484 = vrot.lane.b32.xlu0 %v373, 16
    %v485 = vpop.permute.xlu0 %484
    %486 = vrot.lane.b32.xlu0 %v376, 16
    %v487 = vpop.permute.xlu0 %486
    %492 = vrot.lane.b32.xlu0 %v469, 24
    %v493 = vpop.permute.xlu0 %492
    %494 = vrot.lane.b32.xlu0 %v472, 24
    %v495 = vpop.permute.xlu0 %494
    %v498 = vsel %vm96, %v181, %v477
    %v499 = vsel %vm96, %v184, %v479
    %v500 = vsel %vm128, %v498, %v485
    %v501 = vsel %vm128, %v499, %v487
    %vm502 = vcmask 195584
    %v503 = vsel %vm502, %v500, %v493
    %v504 = vsel %vm502, %v501, %v495
    %v505 = vld [vmem:[%s4] sm:$0xff]
    %v506 = vld [vmem:[%s4 + $0x8] sm:$0xff]
    %v507 = vld [vmem:[%s4 + $0x10] sm:$0xff]
    %v508 = vld [vmem:[%s4 + $0x18] sm:$0xff]
    %v509 = vld [vmem:[%s5] sm:$0x1]
    %v511 = vperm.slane %v509, 0
    %v514 = vsel %vm60, %v503, 0
    %v517 = vsel %vm60, %v504, 0
    %519 = vmatpush.msra.mxu0 0.0
    %520 = vmatpush.msra.mxu0 0.0
    %521 = vmatpush.msra.mxu0 0.0
    %522 = vmatpush.msra.mxu0 0.0
    %523 = vmatpush.msra.mxu0 0.0
    %524 = vmatpush.msra.mxu0 0.0
    %525 = vmatpush.msra.mxu0 0.0
    %526 = vmatpush.msra.mxu0 0.0
    %527 = vmatpush.msra.mxu0 0.0
    %528 = vmatpush.msra.mxu0 0.0
    %529 = vmatpush.msra.mxu0 0.0
    %530 = vmatpush.msra.mxu0 0.0
    %531 = vmatpush.msra.mxu0 %v508
    %532 = vmatpush.msra.mxu0 %v507
    %533 = vmatpush.msra.mxu0 %v506
    %534 = vmatpush.msra.mxu0 %v505
    %535 = vmatmul.f32.gmra.mxu0 %v514
    %v536 = vpop.f32.mrf.mxu0
    %v537 = vadd.f32 %v511, %v536
    %538 = vmatmul.f32.gmra.mxu0 %v517
    %v539 = vpop.f32.mrf.mxu0
    %v540 = vadd.f32 %v511, %v539
    %541 = vdwg.mxu0
    %v542 = vadd.f32 %v48, %v537
    %v543 = vadd.f32 %v49, %v540
    %v544 = vld [vmem:[%s10] sm:$0x1]
    %v545 = vld [vmem:[%s11] sm:$0x1]
    %v546 = vsel %vm60, %v542, 0.0
    %547 = vadd.xlane.f32.xlu0 %v546
    %v548 = vpop.xlane.xlu0 %547
    %v549 = vsel %vm60, %v543, 0.0
    %550 = vadd.xlane.f32.xlu0 %v549
    %v551 = vpop.xlane.xlu0 %550
    %v552 = vrcp.pop 32.0
    %v553 = vmul.f32 32.0, %v552
    %v554 = vsub.f32 1.0, %v553
    %v555 = vmul.f32 %v552, %v554
    %v556 = vadd.f32 %v552, %v555
    %vm557 = vweird.f32 %v552
    %v558 = vsel %vm557, %v552, %v556
    %v559 = vmul.f32 %v548, %v558
    %v560 = vmul.f32 %v551, %v558
    %v561 = vsub.f32 %v542, %v559
    %v562 = vsub.f32 %v543, %v560
    %v563 = vmul.f32 %v561, %v561
    %v564 = vmul.f32 %v562, %v562
    %v565 = vsel %vm60, %v563, 0.0
    %566 = vadd.xlane.f32.xlu0 %v565
    %v567 = vpop.xlane.xlu0 %566
    %v568 = vsel %vm60, %v564, 0.0
    %569 = vadd.xlane.f32.xlu0 %v568
    %v570 = vpop.xlane.xlu0 %569
    %v571 = vmul.f32 %v567, 0.032258064
    %v572 = vmul.f32 %v570, 0.032258064
    %v573 = vrsqrt.pop %v571
    %v574 = vmul.f32 %v573, %v571
    %v575 = vmul.f32 %v574, %v573
    %v576 = vmul.f32 0.5, %v575
    %v577 = vsub.f32 1.5, %v576
    %v578 = vmul.f32 %v573, %v577
    %v579 = vmul.f32 %v571, %v578
    %vm580 = vcmp.eq.f32.partialorder %v571, inf
    %v581 = vsel %vm580, %v571, %v579
    %vm582 = vcmp.eq.f32.partialorder %v571, 0.0
    %v583 = vand.u32 %v571, 2147483648
    %v584 = vsel %vm582, %v583, %v581
    %v585 = vrsqrt.pop %v572
    %v586 = vmul.f32 %v585, %v572
    %v587 = vmul.f32 %v586, %v585
    %v588 = vmul.f32 0.5, %v587
    %v589 = vsub.f32 1.5, %v588
    %v590 = vmul.f32 %v585, %v589
    %v591 = vmul.f32 %v572, %v590
    %vm592 = vcmp.eq.f32.partialorder %v572, inf
    %v593 = vsel %vm592, %v572, %v591
    %vm594 = vcmp.eq.f32.partialorder %v572, 0.0
    %v595 = vand.u32 %v572, 2147483648
    %v596 = vsel %vm594, %v595, %v593
    %v597 = vadd.f32 %v584, 1e-06
    %v598 = vadd.f32 %v596, 1e-06
    %v599 = vrcp.pop %v597
    %v600 = vmul.f32 %v597, %v599
    %v601 = vsub.f32 1.0, %v600
    %v602 = vmul.f32 %v599, %v601
    %v603 = vadd.f32 %v599, %v602
    %vm604 = vweird.f32 %v597
    %vm605 = vweird.f32 %v599
    %vm606 = vmor %vm604, %vm605
    %v607 = vsel %vm606, %v599, %v603
    %v608 = vand.u32 2147483647, %v597
    %vm609 = vcmp.eq.f32.partialorder %v608, 8.507059e+37
    %v610 = vand.u32 %v597, 2147483648
    %v611 = vor.u32 1.1754944e-38, %v610
    %v612 = vsel %vm609, %v611, %v607
    %v613 = vmul.f32 %v561, %v612
    %v614 = vrcp.pop %v598
    %v615 = vmul.f32 %v598, %v614
    %v616 = vsub.f32 1.0, %v615
    %v617 = vmul.f32 %v614, %v616
    %v618 = vadd.f32 %v614, %v617
    %vm619 = vweird.f32 %v598
    %vm620 = vweird.f32 %v614
    %vm621 = vmor %vm619, %vm620
    %v622 = vsel %vm621, %v614, %v618
    %v623 = vand.u32 2147483647, %v598
    %vm624 = vcmp.eq.f32.partialorder %v623, 8.507059e+37
    %v625 = vand.u32 %v598, 2147483648
    %v626 = vor.u32 1.1754944e-38, %v625
    %v627 = vsel %vm624, %v626, %v622
    %v628 = vmul.f32 %v562, %v627
    %v630 = vperm.slane %v544, 0
    %v632 = vmul.f32 %v630, %v613
    %v633 = vmul.f32 %v630, %v628
    %v635 = vperm.slane %v545, 0
    %v637 = vadd.f32 %v632, %v635
    %v638 = vadd.f32 %v633, %v635
    %v639 = vld [vmem:[%s6] sm:$0xff]
    %v640 = vld [vmem:[%s6 + $0x8] sm:$0xff]
    %v641 = vld [vmem:[%s6 + $0x10] sm:$0xff]
    %v642 = vld [vmem:[%s6 + $0x18] sm:$0xff]
    %v643 = vld [vmem:[%s7] sm:$0x1]
    %v645 = vperm.slane %v643, 0
    %v648 = vsel %vm60, %v637, 0
    %v651 = vsel %vm60, %v638, 0
    %653 = vmatpush.msra.mxu0 0.0
    %654 = vmatpush.msra.mxu0 0.0
    %655 = vmatpush.msra.mxu0 0.0
    %656 = vmatpush.msra.mxu0 0.0
    %657 = vmatpush.msra.mxu0 0.0
    %658 = vmatpush.msra.mxu0 0.0
    %659 = vmatpush.msra.mxu0 0.0
    %660 = vmatpush.msra.mxu0 0.0
    %661 = vmatpush.msra.mxu0 0.0
    %662 = vmatpush.msra.mxu0 0.0
    %663 = vmatpush.msra.mxu0 0.0
    %664 = vmatpush.msra.mxu0 0.0
    %665 = vmatpush.msra.mxu0 %v642
    %666 = vmatpush.msra.mxu0 %v641
    %667 = vmatpush.msra.mxu0 %v640
    %668 = vmatpush.msra.mxu0 %v639
    %669 = vmatmul.f32.gmra.mxu0 %v648
    %v670 = vpop.f32.mrf.mxu0
    %v671 = vadd.f32 %v645, %v670
    %672 = vmatmul.f32.gmra.mxu0 %v651
    %v673 = vpop.f32.mrf.mxu0
    %v674 = vadd.f32 %v645, %v673
    %675 = vdwg.mxu0
    %v676 = vmul.f32 %v671, 0.5
    %v677 = vmul.f32 %v674, 0.5
    %v678 = vmul.f32 %v671, 0.044715
    %v679 = vmul.f32 %v674, 0.044715
    %v680 = vmul.f32 %v678, %v671
    %v681 = vmul.f32 %v679, %v674
    %v682 = vmul.f32 %v680, %v671
    %v683 = vmul.f32 %v681, %v674
    %v684 = vadd.f32 %v671, %v682
    %v685 = vadd.f32 %v674, %v683
    %v686 = vmul.f32 %v684, 0.7978846
    %v687 = vmul.f32 %v685, 0.7978846
    %v688 = vtanh.pop %v686
    %v689 = vtanh.pop %v687
    %v690 = vadd.f32 %v688, 1.0
    %v691 = vadd.f32 %v689, 1.0
    %v692 = vmul.f32 %v676, %v690
    %v693 = vmul.f32 %v677, %v691
    %v694 = vld [vmem:[%s8] sm:$0xff]
    %v695 = vld [vmem:[%s8 + $0x8] sm:$0xff]
    %v696 = vld [vmem:[%s8 + $0x10] sm:$0xff]
    %v697 = vld [vmem:[%s8 + $0x18] sm:$0xff]
    %v698 = vld [vmem:[%s8 + $0x20] sm:$0xff]
    %v699 = vld [vmem:[%s8 + $0x28] sm:$0xff]
    %v700 = vld [vmem:[%s8 + $0x30] sm:$0xff]
    %v701 = vld [vmem:[%s8 + $0x38] sm:$0xff]
    %v702 = vld [vmem:[%s8 + $0x40] sm:$0xff]
    %v703 = vld [vmem:[%s8 + $0x48] sm:$0xff]
    %v704 = vld [vmem:[%s8 + $0x50] sm:$0xff]
    %v705 = vld [vmem:[%s8 + $0x58] sm:$0xff]
    %v706 = vld [vmem:[%s8 + $0x60] sm:$0xff]
    %v707 = vld [vmem:[%s8 + $0x68] sm:$0xff]
    %v708 = vld [vmem:[%s8 + $0x70] sm:$0xff]
    %v709 = vld [vmem:[%s8 + $0x78] sm:$0xff]
    %v710 = vld [vmem:[%s9] sm:$0x1]
    %v712 = vperm.slane %v710, 0
    %714 = vmatpush.msra.mxu0 %v709
    %715 = vmatpush.msra.mxu0 %v708
    %716 = vmatpush.msra.mxu0 %v707
    %717 = vmatpush.msra.mxu0 %v706
    %718 = vmatpush.msra.mxu0 %v705
    %719 = vmatpush.msra.mxu0 %v704
    %720 = vmatpush.msra.mxu0 %v703
    %721 = vmatpush.msra.mxu0 %v702
    %722 = vmatpush.msra.mxu0 %v701
    %723 = vmatpush.msra.mxu0 %v700
    %724 = vmatpush.msra.mxu0 %v699
    %725 = vmatpush.msra.mxu0 %v698
    %726 = vmatpush.msra.mxu0 %v697
    %727 = vmatpush.msra.mxu0 %v696
    %728 = vmatpush.msra.mxu0 %v695
    %729 = vmatpush.msra.mxu0 %v694
    %730 = vmatmul.f32.gmra.mxu0 %v692
    %v731 = vpop.f32.mrf.mxu0
    %v732 = vadd.f32 %v712, %v731
    %733 = vmatmul.f32.gmra.mxu0 %v693
    %v734 = vpop.f32.mrf.mxu0
    %v735 = vadd.f32 %v712, %v734
    %736 = vdwg.mxu0
    %v737 = vadd.f32 %v637, %v732
    %v738 = vadd.f32 %v638, %v735
    %v739 = vld [vmem:[%s12] sm:$0x1]
    %v740 = vld [vmem:[%s13] sm:$0x1]
    %v741 = vsel %vm60, %v737, 0.0
    %742 = vadd.xlane.f32.xlu0 %v741
    %v743 = vpop.xlane.xlu0 %742
    %v744 = vsel %vm60, %v738, 0.0
    %745 = vadd.xlane.f32.xlu0 %v744
    %v746 = vpop.xlane.xlu0 %745
    %v747 = vmul.f32 %v743, %v558
    %v748 = vmul.f32 %v746, %v558
    %v749 = vsub.f32 %v737, %v747
    %v750 = vsub.f32 %v738, %v748
    %v751 = vmul.f32 %v749, %v749
    %v752 = vmul.f32 %v750, %v750
    %v753 = vsel %vm60, %v751, 0.0
    %754 = vadd.xlane.f32.xlu0 %v753
    %v755 = vpop.xlane.xlu0 %754
    %v756 = vsel %vm60, %v752, 0.0
    %757 = vadd.xlane.f32.xlu0 %v756
    %v758 = vpop.xlane.xlu0 %757
    %v759 = vmul.f32 %v755, 0.032258064
    %v760 = vmul.f32 %v758, 0.032258064
    %v761 = vrsqrt.pop %v759
    %v762 = vmul.f32 %v761, %v759
    %v763 = vmul.f32 %v762, %v761
    %v764 = vmul.f32 0.5, %v763
    %v765 = vsub.f32 1.5, %v764
    %v766 = vmul.f32 %v761, %v765
    %v767 = vmul.f32 %v759, %v766
    %vm768 = vcmp.eq.f32.partialorder %v759, inf
    %v769 = vsel %vm768, %v759, %v767
    %vm770 = vcmp.eq.f32.partialorder %v759, 0.0
    %v771 = vand.u32 %v759, 2147483648
    %v772 = vsel %vm770, %v771, %v769
    %v773 = vrsqrt.pop %v760
    %v774 = vmul.f32 %v773, %v760
    %v775 = vmul.f32 %v774, %v773
    %v776 = vmul.f32 0.5, %v775
    %v777 = vsub.f32 1.5, %v776
    %v778 = vmul.f32 %v773, %v777
    %v779 = vmul.f32 %v760, %v778
    %vm780 = vcmp.eq.f32.partialorder %v760, inf
    %v781 = vsel %vm780, %v760, %v779
    %vm782 = vcmp.eq.f32.partialorder %v760, 0.0
    %v783 = vand.u32 %v760, 2147483648
    %v784 = vsel %vm782, %v783, %v781
    %v785 = vadd.f32 %v772, 1e-06
    %v786 = vadd.f32 %v784, 1e-06
    %v787 = vrcp.pop %v785
    %v788 = vmul.f32 %v785, %v787
    %v789 = vsub.f32 1.0, %v788
    %v790 = vmul.f32 %v787, %v789
    %v791 = vadd.f32 %v787, %v790
    %vm792 = vweird.f32 %v785
    %vm793 = vweird.f32 %v787
    %vm794 = vmor %vm792, %vm793
    %v795 = vsel %vm794, %v787, %v791
    %v796 = vand.u32 2147483647, %v785
    %vm797 = vcmp.eq.f32.partialorder %v796, 8.507059e+37
    %v798 = vand.u32 %v785, 2147483648
    %v799 = vor.u32 1.1754944e-38, %v798
    %v800 = vsel %vm797, %v799, %v795
    %v801 = vmul.f32 %v749, %v800
    %v802 = vrcp.pop %v786
    %v803 = vmul.f32 %v786, %v802
    %v804 = vsub.f32 1.0, %v803
    %v805 = vmul.f32 %v802, %v804
    %v806 = vadd.f32 %v802, %v805
    %vm807 = vweird.f32 %v786
    %vm808 = vweird.f32 %v802
    %vm809 = vmor %vm807, %vm808
    %v810 = vsel %vm809, %v802, %v806
    %v811 = vand.u32 2147483647, %v786
    %vm812 = vcmp.eq.f32.partialorder %v811, 8.507059e+37
    %v813 = vand.u32 %v786, 2147483648
    %v814 = vor.u32 1.1754944e-38, %v813
    %v815 = vsel %vm812, %v814, %v810
    %v816 = vmul.f32 %v750, %v815
    %v818 = vperm.slane %v739, 0
    %v820 = vmul.f32 %v818, %v801
    %v821 = vmul.f32 %v818, %v816
    %v823 = vperm.slane %v740, 0
    %v825 = vadd.f32 %v820, %v823
    %v826 = vadd.f32 %v821, %v823
    %827 = vst.msk [vmem:[#allocation2] sm:$0xff] %vm60, %v825
    %828 = vst.msk [vmem:[#allocation2 + $0x8] sm:$0xff] %vm60, %v826
    // Predicated region
    $region58: #{transformer_block.1} parent=1 // pred_check
      _
    $region59: #{transformer_block.1} parent=1 // pred_check_branch
      %830 = sbr.rel (0) target = $region61
    $region60: #{transformer_block.1} parent=1 // pred_region
      %832 = vsyncadd [#allocation3], 0
      %s833 = sshll.u32 [#allocation2], 4
      %s834 = int_to_ptr.vmem [resolvable:$true] %s833
      %s835 = sshll.u32 %s14, 4
      %s836 = int_to_ptr.hbm [resolvable:$true] %s835
      %841 = dma.vmem_to_hbm [thread:$0]  %s834, 256, %s836, [#allocation3], 128, 128, 8
    $region61: #{transformer_block.1} parent=1 // pred_fallthru
      _
    // Predicated region
    $region62: #{transformer_block.1} parent=1 // pred_check
      _
    $region63: #{transformer_block.1} parent=1 // pred_check_branch
      %843 = sbr.rel (0) target = $region65
    $region64: #{transformer_block.1} parent=1 // pred_region
      %845 = dma.done [#allocation3], 256
    $region65: #{transformer_block.1} parent=1 // pred_fallthru
      _
    %846 = vsyncpa [#allocation3], 1

</llo_original>
